<compile_context>
chip_gen: v6e
topology: v6e:2x2x1
jax: 0.10.0
libtpu: 0.0.40
codegen_flags: <defaults>
</compile_context>

<pallas_src>
import functools
import math

import jax
import jax.numpy as jnp
from jax.experimental import pallas as pl
from jax.experimental.pallas import tpu as pltpu

LN_EPS = 1e-5  # torch.nn.LayerNorm default


def _cdiv(a, b):
    return (a + b - 1) // b


def _round_up(x, m):
    return ((x + m - 1) // m) * m


@functools.lru_cache(maxsize=1)
def _vmem_capacity_bytes():
    """Per-core VMEM capacity; conservative 64 MiB fallback (v7x) on failure."""
    try:
        return int(pltpu.get_tpu_info().vmem_capacity_bytes)
    except Exception:
        return 64 * 1024 * 1024


@functools.lru_cache(maxsize=1)
def _supports_bf16_vpu():
    """v6e / v7x have bf16 VPU+EUP; v5e does not (bf16 SiLU would only add casts)."""
    try:
        info = pltpu.get_tpu_info()
        name = str(getattr(info, "chip_version", "") or getattr(info, "name", "")).lower()
        if "v5" in name:
            return False
        return True
    except Exception:
        return True


@functools.lru_cache(maxsize=1)
def _single_buffer_mode():
    """Probe-compile a tiny kernel with pl.Buffered(1) on a grid-invariant
    operand.  Returns False (fall back to default double buffering) if this
    JAX/Mosaic build rejects it, so the main kernel always compiles."""
    def _probe_kernel(a_ref, o_ref):
        o_ref[...] = a_ref[...] + 1.0

    try:
        fn = pl.pallas_call(
            _probe_kernel,
            out_shape=jax.ShapeDtypeStruct((16, 128), jnp.float32),
            grid=(2,),
            in_specs=[pl.BlockSpec((8, 128), lambda i: (0, 0),
                                   pipeline_mode=pl.Buffered(1))],
            out_specs=pl.BlockSpec((8, 128), lambda i: (i, 0)),
        )
        jax.jit(fn).lower(jax.ShapeDtypeStruct((8, 128), jnp.float32)).compile()
        return True
    except Exception:
        return False


def _ffn_kernel(x_ref, gamma_ref, beta_ref, w1_ref, b1_ref, w2_ref, b2_ref,
                o_ref, *, act_dtype):
    # --- LayerNorm over last dim: single fused reduction pass (f32 math) ---
    x = x_ref[...].astype(jnp.float32)                          # (TM, D)
    inv_d = 1.0 / x.shape[-1]
    mean = jnp.sum(x, axis=-1, keepdims=True) * inv_d
    mean_sq = jnp.sum(x * x, axis=-1, keepdims=True) * inv_d
    var = jnp.maximum(mean_sq - mean * mean, 0.0)
    xn = (x - mean) * jax.lax.rsqrt(var + LN_EPS)
    xn = xn * gamma_ref[...].astype(jnp.float32) + beta_ref[...].astype(jnp.float32)

    # --- Linear(D -> H) + bias, SiLU ---
    # Weights stay in their native dtype (never re-cast per step); the
    # activation is cast down to match so bf16 weights hit the fast MXU path.
    w1 = w1_ref[...]
    lhs1 = xn if w1.dtype == jnp.float32 else xn.astype(w1.dtype)
    h = jnp.dot(lhs1, w1, preferred_element_type=jnp.float32)
    # bias + SiLU in act_dtype (bf16 on v6e/v7x when the 2nd matmul is bf16;
    # halves the (TM, H) temporary and the VPU/EUP work there).
    h = h.astype(act_dtype) + b1_ref[...].astype(act_dtype)
    h = h * jax.nn.sigmoid(h)                                    # SiLU (EUP)

    # --- Dropout(p=0.0) is identity; skipped ---
    # TODO(synk): training-mode dropout (p > 0) would need pltpu.prng_random_bits.

    # --- Linear(H -> D) + bias ---
    w2 = w2_ref[...]
    lhs2 = h if h.dtype == w2.dtype else h.astype(w2.dtype)
    y = jnp.dot(lhs2, w2, preferred_element_type=jnp.float32)
    y = y + b2_ref[...].astype(jnp.float32)

    o_ref[...] = y.astype(o_ref.dtype)


def _vmem_bytes(br, D, H, x_itemsize, w_itemsize, act_itemsize, weight_bufs):
    """VMEM footprint: double-buffered row tiles (in/out), weight/bias buffers
    (1x when Buffered(1) is available, 2x otherwise), and intermediates."""
    row_tiles = 2 * (2 * br * D * x_itemsize)                  # x + out, 2 bufs each
    weights = weight_bufs * (D * H + H * D) * w_itemsize       # W1 + W2
    biases = weight_bufs * (2 * D + H + D) * 4                 # gamma, beta, b1, b2
    lhs_copy = br * (D + H) * min(4, w_itemsize)               # MXU-feed casts
    interm = br * (2 * D * 4 + H * act_itemsize + D * 4)       # LN temps, h, y(f32)
    return row_tiles + weights + biases + lhs_copy + interm


@functools.partial(jax.jit, static_argnames=("block_rows", "matmul_dtype"))
def feed_forward_module(x, gamma, beta, w1, b1, w2, b2, *, block_rows=512,
                        matmul_dtype=None):
    """x: (*, D).  Weights follow PyTorch Linear semantics y = x @ W.T + b but
    are stored pre-transposed: w1 is (D, H), w2 is (H, D).

    matmul_dtype: optional one-time cast of W1/W2 (e.g. jnp.bfloat16) so the
    MXU runs its fast bf16 path (recommended in production — f32 matmul is a
    slow multi-pass MXU mode on every generation).  None keeps the weights'
    native dtype, which is the bit-faithful f32 path.
    """
    orig_shape = x.shape
    D = orig_shape[-1]
    H = w1.shape[1]
    N = math.prod(orig_shape[:-1])
    if N == 0:
        return x
    x2 = x.reshape(N, D)

    if matmul_dtype is not None:
        w1 = w1.astype(matmul_dtype)
        w2 = w2.astype(matmul_dtype)

    # bias/SiLU compute dtype: bf16 only when the 2nd matmul consumes bf16
    # anyway AND the chip has bf16 VPU/EUP (v6e/v7x); f32 otherwise (v5e).
    act_dtype = (jnp.bfloat16
                 if (w2.dtype == jnp.bfloat16 and _supports_bf16_vpu())
                 else jnp.float32)

    x_itemsize = jnp.dtype(x.dtype).itemsize
    w_itemsize = jnp.dtype(w1.dtype).itemsize
    act_itemsize = jnp.dtype(act_dtype).itemsize
    # Sublane granularity: 8 for 32-bit, 16 for bf16, 32 for 8-bit dtypes.
    sublane = 8 * (4 // max(1, x_itemsize))

    single_buf = _single_buffer_mode()
    weight_bufs = 1 if single_buf else 2

    # Generation-aware VMEM budget: ~3/4 of physical per-core VMEM
    # (≈96 MiB on v5e/v6e's 128 MiB, ≈48 MiB on v7x's 64 MiB).
    capacity = _vmem_capacity_bytes()
    vmem_budget = (capacity * 3) // 4

    # Row-tile: as large as requested, never more than needed for N, always
    # inside the VMEM budget.  Prefer multiples of 256 (fills the 256-wide
    # v6e/v7x MXU; also a 128 multiple for v5e's 128x128 MXU).
    br = min(block_rows, _round_up(N, sublane))
    br = max(sublane, (br // sublane) * sublane)
    if br >= 256:
        br = (br // 256) * 256
    while br > sublane and _vmem_bytes(br, D, H, x_itemsize, w_itemsize,
                                       act_itemsize, weight_bufs) > vmem_budget:
        br = max(sublane, (br // 2 // sublane) * sublane)
    # TODO(synk): for very large f32 D*H on v7x (resident weights > ~1/3 of
    # 64 MiB VMEM) add an H-tiled 'arbitrary' grid axis + f32 accumulator so
    # br does not collapse to the sublane minimum.

    # v7x (2 TensorCores/chip, 64 MiB VMEM/TC): prefer an even grid length so
    # the 'parallel' row axis splits evenly across both cores.
    steps = _cdiv(N, br)
    if capacity <= 64 * 1024 * 1024 and steps > 1 and steps % 2 == 1:
        br_even = max(sublane, _round_up(_cdiv(N, steps + 1), sublane))
        if _cdiv(N, br_even) % 2 == 0:
            br = br_even
            steps = _cdiv(N, br)

    # No jnp.pad / output slice: Pallas masks the edge block when N % br != 0.
    # (Garbage rows in the edge tile may produce NaN locally but row-wise math
    #  never mixes rows and the edge-block store is masked, so it is correct.)
    grid = (steps,)

    need = _vmem_bytes(br, D, H, x_itemsize, w_itemsize, act_itemsize, weight_bufs)
    # 5/4 headroom over the estimate, capped well below physical VMEM
    # (~110 MiB on 128 MiB parts, ~55 MiB on v7x) so Mosaic keeps its scratch.
    vmem_limit = int(min((capacity * 110) // 128,
                         max(32 * 1024 * 1024, (need * 5) // 4)))

    # Advisory cost estimate so XLA schedules neighbours sensibly.
    flops = 4 * N * D * H + 12 * N * D
    transcendentals = N * H + N
    bytes_accessed = (2 * N * D * x_itemsize + 2 * D * H * w_itemsize
                      + (3 * D + H) * 4)
    cost = pl.CostEstimate(flops=flops, transcendentals=transcendentals,
                           bytes_accessed=bytes_accessed)

    def const_spec(shape):
        index_map = lambda i: (0, 0)
        if single_buf:
            # Grid-invariant: fetched once, no second buffer needed.
            return pl.BlockSpec(shape, index_map, pipeline_mode=pl.Buffered(1))
        return pl.BlockSpec(shape, index_map)

    out2 = pl.pallas_call(
        functools.partial(_ffn_kernel, act_dtype=act_dtype),
        out_shape=jax.ShapeDtypeStruct((N, D), x.dtype),
        grid_spec=pltpu.PrefetchScalarGridSpec(
            num_scalar_prefetch=0,
            grid=grid,
            in_specs=[
                pl.BlockSpec((br, D), lambda i: (i, 0)),   # x rows (pipelined)
                const_spec((1, D)),                        # LN gamma (resident)
                const_spec((1, D)),                        # LN beta  (resident)
                const_spec((D, H)),                        # W1 (D,H) (resident)
                const_spec((1, H)),                        # b1       (resident)
                const_spec((H, D)),                        # W2 (H,D) (resident)
                const_spec((1, D)),                        # b2       (resident)
            ],
            out_specs=pl.BlockSpec((br, D), lambda i: (i, 0)),
        ),
        compiler_params=pltpu.CompilerParams(
            dimension_semantics=("parallel",),
            vmem_limit_bytes=vmem_limit,
        ),
        cost_estimate=cost,
    )(x2, gamma.reshape(1, D), beta.reshape(1, D), w1, b1.reshape(1, H),
      w2, b2.reshape(1, D))

    return out2.reshape(orig_shape)


def _reference(x, gamma, beta, w1, b1, w2, b2):
    """Pure-JAX f32 reference for correctness check."""
    xf = x.astype(jnp.float32)
    mean = jnp.mean(xf, axis=-1, keepdims=True)
    var = jnp.mean((xf - mean) ** 2, axis=-1, keepdims=True)
    xn = (xf - mean) / jnp.sqrt(var + LN_EPS) * gamma + beta
    h = xn @ w1 + b1
    h = h * jax.nn.sigmoid(h)
    y = h @ w2 + b2
    return y.astype(x.dtype)


if __name__ == "__main__":
    # Small but lane-dense shapes: batch=2, seq=8, D=128, H=256.
    B, T, D, H = 2, 8, 128, 256

    key = jax.random.PRNGKey(0)
    kx, kg, kb, kw1, kb1, kw2, kb2 = jax.random.split(key, 7)

    x = jax.random.normal(kx, (B, T, D), dtype=jnp.float32)

    # Deterministic synthetic parameters (shapes match the PyTorch module).
    gamma = 1.0 + 0.01 * jax.random.normal(kg, (D,), dtype=jnp.float32)
    beta = 0.01 * jax.random.normal(kb, (D,), dtype=jnp.float32)
    # torch Linear weight is (out, in); stored pre-transposed as (in, out).
    w1 = jax.random.normal(kw1, (D, H), dtype=jnp.float32) / jnp.sqrt(D)
    b1 = 0.01 * jax.random.normal(kb1, (H,), dtype=jnp.float32)
    w2 = jax.random.normal(kw2, (H, D), dtype=jnp.float32) / jnp.sqrt(H)
    b2 = 0.01 * jax.random.normal(kb2, (D,), dtype=jnp.float32)

    ref = _reference(x, gamma, beta, w1, b1, w2, b2)

    # Exact f32 path (weights in their native f32 dtype).
    out = jax.block_until_ready(
        feed_forward_module(x, gamma, beta, w1, b1, w2, b2))
    assert out.shape == (B, T, D)
    assert jnp.allclose(out, ref, atol=1e-4, rtol=1e-4), "f32 path mismatch"

    # Fast bf16-weight MXU path (one-time weight cast; looser tolerance).
    out_bf16 = jax.block_until_ready(
        feed_forward_module(x, gamma, beta, w1, b1, w2, b2,
                            matmul_dtype=jnp.bfloat16))
    assert out_bf16.shape == (B, T, D)
    assert jnp.allclose(out_bf16, ref, atol=5e-2, rtol=5e-2), "bf16 path mismatch"

    print("KERNEL_OK")
</pallas_src>

<mosaic_0001>
module attributes {stable_mosaic.version = 11 : i64} {
  func.func @_ffn_kernel(%arg0: i32, %arg1: memref<16x128xf32, #tpu.memory_space<vmem>>, %arg2: memref<1x128xf32, #tpu.memory_space<vmem>>, %arg3: memref<1x128xf32, #tpu.memory_space<vmem>>, %arg4: memref<128x256xf32, #tpu.memory_space<vmem>>, %arg5: memref<1x256xf32, #tpu.memory_space<vmem>>, %arg6: memref<256x128xf32, #tpu.memory_space<vmem>>, %arg7: memref<1x128xf32, #tpu.memory_space<vmem>>, %arg8: memref<16x128xf32, #tpu.memory_space<vmem>>) attributes {dimension_semantics = [#tpu.dimension_semantics<parallel>], iteration_bounds = array<i64: 1>, scalar_prefetch = 0 : i64, scratch_operands = 0 : i64, tpu.core_type = #tpu.core_type<tc>, window_params = [{transform_indices = @transform_0, window_bounds = array<i64: 16, 128>}, {pipeline_mode = #tpu.pipeline_mode<synchronous>, transform_indices = @transform_1, window_bounds = array<i64: 1, 128>}, {pipeline_mode = #tpu.pipeline_mode<synchronous>, transform_indices = @transform_2, window_bounds = array<i64: 1, 128>}, {pipeline_mode = #tpu.pipeline_mode<synchronous>, transform_indices = @transform_3, window_bounds = array<i64: 128, 256>}, {pipeline_mode = #tpu.pipeline_mode<synchronous>, transform_indices = @transform_4, window_bounds = array<i64: 1, 256>}, {pipeline_mode = #tpu.pipeline_mode<synchronous>, transform_indices = @transform_5, window_bounds = array<i64: 256, 128>}, {pipeline_mode = #tpu.pipeline_mode<synchronous>, transform_indices = @transform_6, window_bounds = array<i64: 1, 128>}, {transform_indices = @transform_7, window_bounds = array<i64: 16, 128>}]} {
    %c0 = arith.constant 0 : index
    %c0_0 = arith.constant 0 : index
    %0 = vector.load %arg1[%c0, %c0_0] : memref<16x128xf32, #tpu.memory_space<vmem>>, vector<16x128xf32>
    %cst = arith.constant dense<0.000000e+00> : vector<16xf32>
    %1 = vector.multi_reduction <add>, %0, %cst [1] : vector<16x128xf32> to vector<16xf32>
    %2 = vector.shape_cast %1 : vector<16xf32> to vector<16x1xf32>
    %cst_1 = arith.constant 7.812500e-03 : f32
    %3 = vector.broadcast %cst_1 : f32 to vector<16x1xf32>
    %4 = arith.mulf %2, %3 : vector<16x1xf32>
    %5 = arith.mulf %0, %0 : vector<16x128xf32>
    %cst_2 = arith.constant dense<0.000000e+00> : vector<16xf32>
    %6 = vector.multi_reduction <add>, %5, %cst_2 [1] : vector<16x128xf32> to vector<16xf32>
    %7 = vector.shape_cast %6 : vector<16xf32> to vector<16x1xf32>
    %cst_3 = arith.constant 7.812500e-03 : f32
    %8 = vector.broadcast %cst_3 : f32 to vector<16x1xf32>
    %9 = arith.mulf %7, %8 : vector<16x1xf32>
    %10 = arith.mulf %4, %4 : vector<16x1xf32>
    %11 = arith.subf %9, %10 : vector<16x1xf32>
    %cst_4 = arith.constant 0.000000e+00 : f32
    %12 = vector.broadcast %cst_4 : f32 to vector<16x1xf32>
    %13 = arith.maximumf %11, %12 : vector<16x1xf32>
    %14 = vector.broadcast %4 : vector<16x1xf32> to vector<16x128xf32>
    %15 = arith.subf %0, %14 : vector<16x128xf32>
    %cst_5 = arith.constant 9.99999974E-6 : f32
    %16 = vector.broadcast %cst_5 : f32 to vector<16x1xf32>
    %17 = arith.addf %13, %16 : vector<16x1xf32>
    %18 = math.rsqrt %17 : vector<16x1xf32>
    %19 = vector.broadcast %18 : vector<16x1xf32> to vector<16x128xf32>
    %20 = arith.mulf %15, %19 : vector<16x128xf32>
    %c0_6 = arith.constant 0 : index
    %c0_7 = arith.constant 0 : index
    %21 = vector.load %arg2[%c0_6, %c0_7] : memref<1x128xf32, #tpu.memory_space<vmem>>, vector<1x128xf32>
    %22 = vector.broadcast %21 : vector<1x128xf32> to vector<16x128xf32>
    %23 = arith.mulf %20, %22 : vector<16x128xf32>
    %c0_8 = arith.constant 0 : index
    %c0_9 = arith.constant 0 : index
    %24 = vector.load %arg3[%c0_8, %c0_9] : memref<1x128xf32, #tpu.memory_space<vmem>>, vector<1x128xf32>
    %25 = vector.broadcast %24 : vector<1x128xf32> to vector<16x128xf32>
    %26 = arith.addf %23, %25 : vector<16x128xf32>
    %c0_10 = arith.constant 0 : index
    %c0_11 = arith.constant 0 : index
    %27 = vector.load %arg4[%c0_10, %c0_11] : memref<128x256xf32, #tpu.memory_space<vmem>>, vector<128x256xf32>
    %cst_12 = arith.constant dense<0.000000e+00> : vector<16x256xf32>
    %28 = tpu.matmul %26, %27, %cst_12 {dimension_numbers = #tpu.dot_dimension_numbers<[1], [0], [0], [1], [0, 0, 1, 1], [], []>} : vector<16x128xf32>, vector<128x256xf32>, vector<16x256xf32> -> vector<16x256xf32>
    %c0_13 = arith.constant 0 : index
    %c0_14 = arith.constant 0 : index
    %29 = vector.load %arg5[%c0_13, %c0_14] : memref<1x256xf32, #tpu.memory_space<vmem>>, vector<1x256xf32>
    %30 = vector.broadcast %29 : vector<1x256xf32> to vector<16x256xf32>
    %31 = arith.addf %28, %30 : vector<16x256xf32>
    %32 = arith.negf %31 : vector<16x256xf32>
    %33 = math.exp %32 : vector<16x256xf32>
    %cst_15 = arith.constant 1.000000e+00 : f32
    %34 = vector.broadcast %cst_15 : f32 to vector<16x256xf32>
    %35 = arith.addf %34, %33 : vector<16x256xf32>
    %36 = arith.divf %34, %35 : vector<16x256xf32>
    %37 = arith.mulf %31, %36 : vector<16x256xf32>
    %c0_16 = arith.constant 0 : index
    %c0_17 = arith.constant 0 : index
    %38 = vector.load %arg6[%c0_16, %c0_17] : memref<256x128xf32, #tpu.memory_space<vmem>>, vector<256x128xf32>
    %cst_18 = arith.constant dense<0.000000e+00> : vector<16x128xf32>
    %39 = tpu.matmul %37, %38, %cst_18 {dimension_numbers = #tpu.dot_dimension_numbers<[1], [0], [0], [1], [0, 0, 1, 1], [], []>} : vector<16x256xf32>, vector<256x128xf32>, vector<16x128xf32> -> vector<16x128xf32>
    %c0_19 = arith.constant 0 : index
    %c0_20 = arith.constant 0 : index
    %40 = vector.load %arg7[%c0_19, %c0_20] : memref<1x128xf32, #tpu.memory_space<vmem>>, vector<1x128xf32>
    %41 = vector.broadcast %40 : vector<1x128xf32> to vector<16x128xf32>
    %42 = arith.addf %39, %41 : vector<16x128xf32>
    %c0_21 = arith.constant 0 : index
    %c0_22 = arith.constant 0 : index
    %43 = vector.load %arg8[%c0_21, %c0_22] : memref<16x128xf32, #tpu.memory_space<vmem>>, vector<16x128xf32>
    tpu.vector_store %arg8[%c0_21, %c0_22], %42 {strides = array<i32>} : memref<16x128xf32, #tpu.memory_space<vmem>>, vector<16x128xf32>,
    return
  }
  func.func @transform_0(%arg0: i32) -> (i32, i32) {
    %c0_i32 = arith.constant 0 : i32
    %c0_i32_0 = arith.constant 0 : i32
    return %arg0, %c0_i32 : i32, i32
  }
  func.func @transform_1(%arg0: i32) -> (i32, i32) {
    %c0_i32 = arith.constant 0 : i32
    %c0_i32_0 = arith.constant 0 : i32
    %c0_i32_1 = arith.constant 0 : i32
    return %c0_i32, %c0_i32_0 : i32, i32
  }
  func.func @transform_2(%arg0: i32) -> (i32, i32) {
    %c0_i32 = arith.constant 0 : i32
    %c0_i32_0 = arith.constant 0 : i32
    %c0_i32_1 = arith.constant 0 : i32
    return %c0_i32, %c0_i32_0 : i32, i32
  }
  func.func @transform_3(%arg0: i32) -> (i32, i32) {
    %c0_i32 = arith.constant 0 : i32
    %c0_i32_0 = arith.constant 0 : i32
    %c0_i32_1 = arith.constant 0 : i32
    return %c0_i32, %c0_i32_0 : i32, i32
  }
  func.func @transform_4(%arg0: i32) -> (i32, i32) {
    %c0_i32 = arith.constant 0 : i32
    %c0_i32_0 = arith.constant 0 : i32
    %c0_i32_1 = arith.constant 0 : i32
    return %c0_i32, %c0_i32_0 : i32, i32
  }
  func.func @transform_5(%arg0: i32) -> (i32, i32) {
    %c0_i32 = arith.constant 0 : i32
    %c0_i32_0 = arith.constant 0 : i32
    %c0_i32_1 = arith.constant 0 : i32
    return %c0_i32, %c0_i32_0 : i32, i32
  }
  func.func @transform_6(%arg0: i32) -> (i32, i32) {
    %c0_i32 = arith.constant 0 : i32
    %c0_i32_0 = arith.constant 0 : i32
    %c0_i32_1 = arith.constant 0 : i32
    return %c0_i32, %c0_i32_0 : i32, i32
  }
  func.func @transform_7(%arg0: i32) -> (i32, i32) {
    %c0_i32 = arith.constant 0 : i32
    %c0_i32_0 = arith.constant 0 : i32
    return %arg0, %c0_i32 : i32, i32
  }
}

</mosaic_0001>

<llo_original>
// kernel: feed_forward_module.1
$region0: #{feed_forward_module.1}
  #allocation0 [shape = 'u32[]', space=smem, size = 0x4, offset = 0x4, fixed_abs, tag = 'smem constant byte address 0x4 - core index']
  #allocation1 [shape = 'u32[144,128]{1,0:T(1,128)}', space=vmem, size = 0x12000, scoped, tag = 'internal scratch']
  %s0 = inlined_call_operand.hbm [shape: f32[16,128], index: 0, kind: input, shape index: {}]
  %s1 = inlined_call_operand.vmem [shape: f32[1,128], index: 1, kind: input, shape index: {}]
  %s2 = inlined_call_operand.vmem [shape: f32[1,128], index: 2, kind: input, shape index: {}]
  %s3 = inlined_call_operand.hbm [shape: f32[128,256], index: 3, kind: input, shape index: {}]
  %s4 = inlined_call_operand.vmem [shape: f32[1,256], index: 4, kind: input, shape index: {}]
  %s5 = inlined_call_operand.hbm [shape: f32[256,128], index: 5, kind: input, shape index: {}]
  %s6 = inlined_call_operand.vmem [shape: f32[1,128], index: 6, kind: input, shape index: {}]
  %s7 = inlined_call_operand.hbm [shape: f32[16,128], index: 7, kind: output, shape index: {}]
  %s8 = sld [smem:[#allocation0]]
  $region50: #{feed_forward_module.1} parent=0
    _
  %s10 = ssub.s32 1, %s8
  %s11 = scalar_select 0, %s10, %s8
  $region1: #{feed_forward_module.1} parent=0
    #allocation2 [shape = 'u8[8192]{0}', space=vmem, size = 0x2000, scoped, tag = 'input window, operand 0, single buffered']
    #allocation3 [shape = 's32[1]{0}', space=sflag, size = 0x4, scoped, tag = 'scoped memory for feed_forward_module.1']
    #allocation4 [shape = 's32[1]{0}', space=sflag, size = 0x4, scoped, tag = 'scoped memory for feed_forward_module.1']
    #allocation5 [shape = 'u8[131072]{0}', space=vmem, size = 0x20000, scoped, tag = 'input window, operand 3, single buffered']
    #allocation6 [shape = 's32[1]{0}', space=sflag, size = 0x4, scoped, tag = 'scoped memory for feed_forward_module.1']
    #allocation7 [shape = 'u8[131072]{0}', space=vmem, size = 0x20000, scoped, tag = 'input window, operand 5, single buffered']
    #allocation8 [shape = 'u8[8192]{0}', space=vmem, size = 0x2000, scoped, tag = 'output window, operand 0, single buffered']
    %12 = vsyncpa [#allocation3], 0
    %13 = vsyncpa [#allocation6], 0
    %14 = vsyncpa [#allocation4], 0
    // Predicated region
    $region2: #{feed_forward_module.1} parent=1 // pred_check
      _
    $region3: #{feed_forward_module.1} parent=1 // pred_check_branch
      %16 = sbr.rel (0) target = $region5
    $region4: #{feed_forward_module.1} parent=1 // pred_region
      %s18 = ssub.s32 256, 256
      %19 = vsyncadd [#allocation3], %s18
      %s20 = sshll.u32 [#allocation2], 4
      %s21 = int_to_ptr.vmem [resolvable:$true] %s20
      %26 = dma.hbm_to_vmem [thread:$0]  %s0, 256, %s21, [#allocation3], 128, 128, 8
    $region5: #{feed_forward_module.1} parent=1 // pred_fallthru
      _
    // Predicated region
    $region6: #{feed_forward_module.1} parent=1 // pred_check
      _
    $region7: #{feed_forward_module.1} parent=1 // pred_check_branch
      %28 = sbr.rel (0) target = $region9
    $region8: #{feed_forward_module.1} parent=1 // pred_region
      _
    $region9: #{feed_forward_module.1} parent=1 // pred_fallthru
      _
    // Predicated region
    $region10: #{feed_forward_module.1} parent=1 // pred_check
      _
    $region11: #{feed_forward_module.1} parent=1 // pred_check_branch
      %30 = sbr.rel (0) target = $region13
    $region12: #{feed_forward_module.1} parent=1 // pred_region
      _
    $region13: #{feed_forward_module.1} parent=1 // pred_fallthru
      _
    // Predicated region
    $region14: #{feed_forward_module.1} parent=1 // pred_check
      _
    $region15: #{feed_forward_module.1} parent=1 // pred_check_branch
      %32 = sbr.rel (0) target = $region17
    $region16: #{feed_forward_module.1} parent=1 // pred_region
      %s34 = ssub.s32 4096, 4096
      %35 = vsyncadd [#allocation6], %s34
      %s36 = sshll.u32 [#allocation5], 4
      %s37 = int_to_ptr.vmem [resolvable:$true] %s36
      %42 = dma.hbm_to_vmem [thread:$0]  %s3, 4096, %s37, [#allocation6], 256, 256, 16
    $region17: #{feed_forward_module.1} parent=1 // pred_fallthru
      _
    // Predicated region
    $region18: #{feed_forward_module.1} parent=1 // pred_check
      _
    $region19: #{feed_forward_module.1} parent=1 // pred_check_branch
      %44 = sbr.rel (0) target = $region21
    $region20: #{feed_forward_module.1} parent=1 // pred_region
      _
    $region21: #{feed_forward_module.1} parent=1 // pred_fallthru
      _
    // Predicated region
    $region22: #{feed_forward_module.1} parent=1 // pred_check
      _
    $region23: #{feed_forward_module.1} parent=1 // pred_check_branch
      %46 = sbr.rel (0) target = $region25
    $region24: #{feed_forward_module.1} parent=1 // pred_region
      %s48 = ssub.s32 4096, 4096
      %49 = vsyncadd [#allocation6], %s48
      %s50 = sshll.u32 [#allocation7], 4
      %s51 = int_to_ptr.vmem [resolvable:$true] %s50
      %56 = dma.hbm_to_vmem [thread:$0]  %s5, 4096, %s51, [#allocation6], 128, 128, 8
    $region25: #{feed_forward_module.1} parent=1 // pred_fallthru
      _
    // Predicated region
    $region26: #{feed_forward_module.1} parent=1 // pred_check
      _
    $region27: #{feed_forward_module.1} parent=1 // pred_check_branch
      %58 = sbr.rel (0) target = $region29
    $region28: #{feed_forward_module.1} parent=1 // pred_region
      _
    $region29: #{feed_forward_module.1} parent=1 // pred_fallthru
      _
    // Predicated region
    $region30: #{feed_forward_module.1} parent=1 // pred_check
      _
    $region31: #{feed_forward_module.1} parent=1 // pred_check_branch
      %60 = sbr.rel (0) target = $region33
    $region32: #{feed_forward_module.1} parent=1 // pred_region
      %61 = dma.done [#allocation3], 256
    $region33: #{feed_forward_module.1} parent=1 // pred_fallthru
      _
    // Predicated region
    $region34: #{feed_forward_module.1} parent=1 // pred_check
      _
    $region35: #{feed_forward_module.1} parent=1 // pred_check_branch
      %63 = sbr.rel (0) target = $region37
    $region36: #{feed_forward_module.1} parent=1 // pred_region
      %64 = dma.done [#allocation6], 4096
    $region37: #{feed_forward_module.1} parent=1 // pred_fallthru
      _
    // Predicated region
    $region38: #{feed_forward_module.1} parent=1 // pred_check
      _
    $region39: #{feed_forward_module.1} parent=1 // pred_check_branch
      %66 = sbr.rel (0) target = $region41
    $region40: #{feed_forward_module.1} parent=1 // pred_region
      %67 = dma.done [#allocation6], 4096
    $region41: #{feed_forward_module.1} parent=1 // pred_fallthru
      _
    %v68 = vld [vmem:[#allocation2] sm:$0xff]
    %v69 = vld [vmem:[#allocation2 + $0x8] sm:$0xff]
    %70 = vadd.xlane.f32.xlu0 %v68
    %v71 = vpop.xlane.xlu0 %70
    %72 = vadd.xlane.f32.xlu0 %v69
    %v73 = vpop.xlane.xlu0 %72
    %v74 = vmul.f32 %v71, 0.0078125
    %v75 = vmul.f32 %v73, 0.0078125
    %v76 = vmul.f32 %v68, %v68
    %v77 = vmul.f32 %v69, %v69
    %78 = vadd.xlane.f32.xlu0 %v76
    %v79 = vpop.xlane.xlu0 %78
    %80 = vadd.xlane.f32.xlu0 %v77
    %v81 = vpop.xlane.xlu0 %80
    %v82 = vmul.f32 %v79, 0.0078125
    %v83 = vmul.f32 %v81, 0.0078125
    %v84 = vmul.f32 %v74, %v74
    %v85 = vmul.f32 %v75, %v75
    %v86 = vsub.f32 %v82, %v84
    %v87 = vsub.f32 %v83, %v85
    %v88 = vmax.f32 %v86, 0.0
    %v89 = vmax.f32 %v87, 0.0
    %v90 = vsub.f32 %v68, %v74
    %v91 = vsub.f32 %v69, %v75
    %v92 = vadd.f32 %v88, 1e-05
    %v93 = vadd.f32 %v89, 1e-05
    %v94 = vrsqrt.pop %v92
    %v95 = vrsqrt.pop %v93
    %v96 = vmul.f32 %v90, %v94
    %v97 = vmul.f32 %v91, %v95
    %v98 = vld [vmem:[%s1] sm:$0x1]
    %v100 = vlaneseq
    %v101 = vshrl.u32 %v100, 7
    %v102 = vsub.s32 0, %v101
    %v103 = vrot.slane %v98, %v102
    %v105 = vmul.f32 %v96, %v103
    %v106 = vmul.f32 %v97, %v103
    %v107 = vld [vmem:[%s2] sm:$0x1]
    %v109 = vlaneseq
    %v110 = vshrl.u32 %v109, 7
    %v111 = vsub.s32 0, %v110
    %v112 = vrot.slane %v107, %v111
    %v114 = vadd.f32 %v105, %v112
    %v115 = vadd.f32 %v106, %v112
    %v116 = vld [vmem:[#allocation5] sm:$0xff]
    %v117 = vld [vmem:[#allocation5 + $0x8] sm:$0xff]
    %v118 = vld [vmem:[#allocation5 + $0x10] sm:$0xff]
    %v119 = vld [vmem:[#allocation5 + $0x18] sm:$0xff]
    %v120 = vld [vmem:[#allocation5 + $0x20] sm:$0xff]
    %v121 = vld [vmem:[#allocation5 + $0x28] sm:$0xff]
    %v122 = vld [vmem:[#allocation5 + $0x30] sm:$0xff]
    %v123 = vld [vmem:[#allocation5 + $0x38] sm:$0xff]
    %v124 = vld [vmem:[#allocation5 + $0x40] sm:$0xff]
    %v125 = vld [vmem:[#allocation5 + $0x48] sm:$0xff]
    %v126 = vld [vmem:[#allocation5 + $0x50] sm:$0xff]
    %v127 = vld [vmem:[#allocation5 + $0x58] sm:$0xff]
    %v128 = vld [vmem:[#allocation5 + $0x60] sm:$0xff]
    %v129 = vld [vmem:[#allocation5 + $0x68] sm:$0xff]
    %v130 = vld [vmem:[#allocation5 + $0x70] sm:$0xff]
    %v131 = vld [vmem:[#allocation5 + $0x78] sm:$0xff]
    %v132 = vld [vmem:[#allocation5 + $0x80] sm:$0xff]
    %v133 = vld [vmem:[#allocation5 + $0x88] sm:$0xff]
    %v134 = vld [vmem:[#allocation5 + $0x90] sm:$0xff]
    %v135 = vld [vmem:[#allocation5 + $0x98] sm:$0xff]
    %v136 = vld [vmem:[#allocation5 + $0xa0] sm:$0xff]
    %v137 = vld [vmem:[#allocation5 + $0xa8] sm:$0xff]
    %v138 = vld [vmem:[#allocation5 + $0xb0] sm:$0xff]
    %v139 = vld [vmem:[#allocation5 + $0xb8] sm:$0xff]
    %v140 = vld [vmem:[#allocation5 + $0xc0] sm:$0xff]
    %v141 = vld [vmem:[#allocation5 + $0xc8] sm:$0xff]
    %v142 = vld [vmem:[#allocation5 + $0xd0] sm:$0xff]
    %v143 = vld [vmem:[#allocation5 + $0xd8] sm:$0xff]
    %v144 = vld [vmem:[#allocation5 + $0xe0] sm:$0xff]
    %v145 = vld [vmem:[#allocation5 + $0xe8] sm:$0xff]
    %v146 = vld [vmem:[#allocation5 + $0xf0] sm:$0xff]
    %v147 = vld [vmem:[#allocation5 + $0xf8] sm:$0xff]
    %v148 = vld [vmem:[%s4] sm:$0x3]
    %v150 = vlaneseq
    %v151 = vshrl.u32 %v150, 7
    %v152 = vsub.s32 0, %v151
    %v153 = vrot.slane %v148, %v152
    %v154 = vlaneseq
    %v155 = vshrl.u32 %v154, 7
    %v156 = vsub.s32 1, %v155
    %v157 = vrot.slane %v148, %v156
    %160 = vmatprep.subr.mxu0 %v147
    %161 = vmatpush1.msra.mxu0 %v146
    %162 = vmatprep.subr.mxu0 %v145
    %163 = vmatpush1.msra.mxu0 %v144
    %164 = vmatprep.subr.mxu0 %v143
    %165 = vmatpush1.msra.mxu0 %v142
    %166 = vmatprep.subr.mxu0 %v141
    %167 = vmatpush1.msra.mxu0 %v140
    %168 = vmatprep.subr.mxu0 %v139
    %169 = vmatpush1.msra.mxu0 %v138
    %170 = vmatprep.subr.mxu0 %v137
    %171 = vmatpush1.msra.mxu0 %v136
    %172 = vmatprep.subr.mxu0 %v135
    %173 = vmatpush1.msra.mxu0 %v134
    %174 = vmatprep.subr.mxu0 %v133
    %175 = vmatpush1.msra.mxu0 %v132
    %176 = vmatprep.subr.mxu0 %v131
    %177 = vmatpush1.msra.mxu0 %v130
    %178 = vmatprep.subr.mxu0 %v129
    %179 = vmatpush1.msra.mxu0 %v128
    %180 = vmatprep.subr.mxu0 %v127
    %181 = vmatpush1.msra.mxu0 %v126
    %182 = vmatprep.subr.mxu0 %v125
    %183 = vmatpush1.msra.mxu0 %v124
    %184 = vmatprep.subr.mxu0 %v123
    %185 = vmatpush1.msra.mxu0 %v122
    %186 = vmatprep.subr.mxu0 %v121
    %187 = vmatpush1.msra.mxu0 %v120
    %188 = vmatprep.subr.mxu0 %v119
    %189 = vmatpush1.msra.mxu0 %v118
    %190 = vmatprep.subr.mxu0 %v117
    %191 = vmatpush1.msra.mxu0 %v116
    %192 = vmatprep.subr.mxu0 0.0
    %193 = vmatpush2.msra.mxu0 0.0
    %194 = vmatprep.subr.mxu0 0.0
    %195 = vmatpush2.msra.mxu0 0.0
    %196 = vmatprep.subr.mxu0 0.0
    %197 = vmatpush2.msra.mxu0 0.0
    %198 = vmatprep.subr.mxu0 0.0
    %199 = vmatpush2.msra.mxu0 0.0
    %200 = vmatprep.subr.mxu0 0.0
    %201 = vmatpush2.msra.mxu0 0.0
    %202 = vmatprep.subr.mxu0 0.0
    %203 = vmatpush2.msra.mxu0 0.0
    %204 = vmatprep.subr.mxu0 0.0
    %205 = vmatpush2.msra.mxu0 0.0
    %206 = vmatprep.subr.mxu0 0.0
    %207 = vmatpush2.msra.mxu0 0.0
    %208 = vmatprep.subr.mxu0 0.0
    %209 = vmatpush2.msra.mxu0 0.0
    %210 = vmatprep.subr.mxu0 0.0
    %211 = vmatpush2.msra.mxu0 0.0
    %212 = vmatprep.subr.mxu0 0.0
    %213 = vmatpush2.msra.mxu0 0.0
    %214 = vmatprep.subr.mxu0 0.0
    %215 = vmatpush2.msra.mxu0 0.0
    %216 = vmatprep.subr.mxu0 0.0
    %217 = vmatpush2.msra.mxu0 0.0
    %218 = vmatprep.subr.mxu0 0.0
    %219 = vmatpush2.msra.mxu0 0.0
    %220 = vmatprep.subr.mxu0 0.0
    %221 = vmatpush2.msra.mxu0 0.0
    %222 = vmatprep.subr.mxu0 0.0
    %223 = vmatpush2.msra.mxu0 0.0
    %224 = vmatprep.mubr.f32.mxu0 0.0
    %225 = vmatmul.mubr.f32.gmra.mxu0 %v114
    %v226 = vpop.f32.mrf.mxu0
    %v227 = vadd.f32 %v153, %v226
    %v228 = vpop.f32.mrf.mxu0
    %v229 = vadd.f32 %v157, %v228
    %230 = vmatprep.mubr.f32.mxu0 0.0
    %231 = vmatmul.mubr.f32.gmra.mxu0 %v115
    %v232 = vpop.f32.mrf.mxu0
    %v233 = vadd.f32 %v153, %v232
    %v234 = vpop.f32.mrf.mxu0
    %v235 = vadd.f32 %v157, %v234
    %236 = vdwg.mxu0
    %v237 = vxor.u32 %v227, 2147483648
    %v238 = vxor.u32 %v229, 2147483648
    %v239 = vxor.u32 %v233, 2147483648
    %v240 = vxor.u32 %v235, 2147483648
    %v241 = vmul.f32 %v237, 1.442695
    %v242 = vpow.pop %v241
    %v243 = vmul.f32 %v238, 1.442695
    %v244 = vpow.pop %v243
    %v245 = vmul.f32 %v239, 1.442695
    %v246 = vpow.pop %v245
    %v247 = vmul.f32 %v240, 1.442695
    %v248 = vpow.pop %v247
    %v249 = vadd.f32 %v242, 1.0
    %v250 = vadd.f32 %v244, 1.0
    %v251 = vadd.f32 %v246, 1.0
    %v252 = vadd.f32 %v248, 1.0
    %v253 = vrcp.pop %v249
    %v254 = vmul.f32 1.0, %v253
    %v255 = vrcp.pop %v250
    %v256 = vmul.f32 1.0, %v255
    %v257 = vrcp.pop %v251
    %v258 = vmul.f32 1.0, %v257
    %v259 = vrcp.pop %v252
    %v260 = vmul.f32 1.0, %v259
    %v261 = vmul.f32 %v227, %v254
    %v262 = vmul.f32 %v229, %v256
    %v263 = vmul.f32 %v233, %v258
    %v264 = vmul.f32 %v235, %v260
    %v265 = vld [vmem:[#allocation7] sm:$0xff]
    %v266 = vld [vmem:[#allocation7 + $0x8] sm:$0xff]
    %v267 = vld [vmem:[#allocation7 + $0x10] sm:$0xff]
    %v268 = vld [vmem:[#allocation7 + $0x18] sm:$0xff]
    %v269 = vld [vmem:[#allocation7 + $0x20] sm:$0xff]
    %v270 = vld [vmem:[#allocation7 + $0x28] sm:$0xff]
    %v271 = vld [vmem:[#allocation7 + $0x30] sm:$0xff]
    %v272 = vld [vmem:[#allocation7 + $0x38] sm:$0xff]
    %v273 = vld [vmem:[#allocation7 + $0x40] sm:$0xff]
    %v274 = vld [vmem:[#allocation7 + $0x48] sm:$0xff]
    %v275 = vld [vmem:[#allocation7 + $0x50] sm:$0xff]
    %v276 = vld [vmem:[#allocation7 + $0x58] sm:$0xff]
    %v277 = vld [vmem:[#allocation7 + $0x60] sm:$0xff]
    %v278 = vld [vmem:[#allocation7 + $0x68] sm:$0xff]
    %v279 = vld [vmem:[#allocation7 + $0x70] sm:$0xff]
    %v280 = vld [vmem:[#allocation7 + $0x78] sm:$0xff]
    %v281 = vld [vmem:[#allocation7 + $0x80] sm:$0xff]
    %v282 = vld [vmem:[#allocation7 + $0x88] sm:$0xff]
    %v283 = vld [vmem:[#allocation7 + $0x90] sm:$0xff]
    %v284 = vld [vmem:[#allocation7 + $0x98] sm:$0xff]
    %v285 = vld [vmem:[#allocation7 + $0xa0] sm:$0xff]
    %v286 = vld [vmem:[#allocation7 + $0xa8] sm:$0xff]
    %v287 = vld [vmem:[#allocation7 + $0xb0] sm:$0xff]
    %v288 = vld [vmem:[#allocation7 + $0xb8] sm:$0xff]
    %v289 = vld [vmem:[#allocation7 + $0xc0] sm:$0xff]
    %v290 = vld [vmem:[#allocation7 + $0xc8] sm:$0xff]
    %v291 = vld [vmem:[#allocation7 + $0xd0] sm:$0xff]
    %v292 = vld [vmem:[#allocation7 + $0xd8] sm:$0xff]
    %v293 = vld [vmem:[#allocation7 + $0xe0] sm:$0xff]
    %v294 = vld [vmem:[#allocation7 + $0xe8] sm:$0xff]
    %v295 = vld [vmem:[#allocation7 + $0xf0] sm:$0xff]
    %v296 = vld [vmem:[#allocation7 + $0xf8] sm:$0xff]
    %v297 = vld [vmem:[%s6] sm:$0x1]
    %v299 = vlaneseq
    %v300 = vshrl.u32 %v299, 7
    %v301 = vsub.s32 0, %v300
    %v302 = vrot.slane %v297, %v301
    %304 = vmatprep.subr.mxu0 0.0
    %305 = vmatpush1.msra.mxu0 %v280
    %306 = vmatprep.subr.mxu0 0.0
    %307 = vmatpush1.msra.mxu0 %v279
    %308 = vmatprep.subr.mxu0 0.0
    %309 = vmatpush1.msra.mxu0 %v278
    %310 = vmatprep.subr.mxu0 0.0
    %311 = vmatpush1.msra.mxu0 %v277
    %312 = vmatprep.subr.mxu0 0.0
    %313 = vmatpush1.msra.mxu0 %v276
    %314 = vmatprep.subr.mxu0 0.0
    %315 = vmatpush1.msra.mxu0 %v275
    %316 = vmatprep.subr.mxu0 0.0
    %317 = vmatpush1.msra.mxu0 %v274
    %318 = vmatprep.subr.mxu0 0.0
    %319 = vmatpush1.msra.mxu0 %v273
    %320 = vmatprep.subr.mxu0 0.0
    %321 = vmatpush1.msra.mxu0 %v272
    %322 = vmatprep.subr.mxu0 0.0
    %323 = vmatpush1.msra.mxu0 %v271
    %324 = vmatprep.subr.mxu0 0.0
    %325 = vmatpush1.msra.mxu0 %v270
    %326 = vmatprep.subr.mxu0 0.0
    %327 = vmatpush1.msra.mxu0 %v269
    %328 = vmatprep.subr.mxu0 0.0
    %329 = vmatpush1.msra.mxu0 %v268
    %330 = vmatprep.subr.mxu0 0.0
    %331 = vmatpush1.msra.mxu0 %v267
    %332 = vmatprep.subr.mxu0 0.0
    %333 = vmatpush1.msra.mxu0 %v266
    %334 = vmatprep.subr.mxu0 0.0
    %335 = vmatpush1.msra.mxu0 %v265
    %336 = vmatprep.subr.mxu0 0.0
    %337 = vmatpush2.msra.mxu0 %v296
    %338 = vmatprep.subr.mxu0 0.0
    %339 = vmatpush2.msra.mxu0 %v295
    %340 = vmatprep.subr.mxu0 0.0
    %341 = vmatpush2.msra.mxu0 %v294
    %342 = vmatprep.subr.mxu0 0.0
    %343 = vmatpush2.msra.mxu0 %v293
    %344 = vmatprep.subr.mxu0 0.0
    %345 = vmatpush2.msra.mxu0 %v292
    %346 = vmatprep.subr.mxu0 0.0
    %347 = vmatpush2.msra.mxu0 %v291
    %348 = vmatprep.subr.mxu0 0.0
    %349 = vmatpush2.msra.mxu0 %v290
    %350 = vmatprep.subr.mxu0 0.0
    %351 = vmatpush2.msra.mxu0 %v289
    %352 = vmatprep.subr.mxu0 0.0
    %353 = vmatpush2.msra.mxu0 %v288
    %354 = vmatprep.subr.mxu0 0.0
    %355 = vmatpush2.msra.mxu0 %v287
    %356 = vmatprep.subr.mxu0 0.0
    %357 = vmatpush2.msra.mxu0 %v286
    %358 = vmatprep.subr.mxu0 0.0
    %359 = vmatpush2.msra.mxu0 %v285
    %360 = vmatprep.subr.mxu0 0.0
    %361 = vmatpush2.msra.mxu0 %v284
    %362 = vmatprep.subr.mxu0 0.0
    %363 = vmatpush2.msra.mxu0 %v283
    %364 = vmatprep.subr.mxu0 0.0
    %365 = vmatpush2.msra.mxu0 %v282
    %366 = vmatprep.subr.mxu0 0.0
    %367 = vmatpush2.msra.mxu0 %v281
    %368 = vmatprep.mubr.f32.mxu0 %v262
    %369 = vmatmul.mubr.f32.gmra.mxu0 %v261
    %v370 = vpop.f32.mrf.mxu0
    %v371 = vadd.f32 %v302, %v370
    %v372 = vpop.f32.mrf.mxu0
    %373 = vmatprep.mubr.f32.mxu0 %v264
    %374 = vmatmul.mubr.f32.gmra.mxu0 %v263
    %v375 = vpop.f32.mrf.mxu0
    %v376 = vadd.f32 %v302, %v375
    %v377 = vpop.f32.mrf.mxu0
    %378 = vdwg.mxu0
    %379 = vst [vmem:[#allocation8] sm:$0xff] %v371
    %380 = vst [vmem:[#allocation8 + $0x8] sm:$0xff] %v376
    // Predicated region
    $region42: #{feed_forward_module.1} parent=1 // pred_check
      _
    $region43: #{feed_forward_module.1} parent=1 // pred_check_branch
      %382 = sbr.rel (0) target = $region45
    $region44: #{feed_forward_module.1} parent=1 // pred_region
      %s384 = ssub.s32 256, 256
      %385 = vsyncadd [#allocation4], %s384
      %s386 = sshll.u32 [#allocation8], 4
      %s387 = int_to_ptr.vmem [resolvable:$true] %s386
      %392 = dma.vmem_to_hbm [thread:$0]  %s387, 256, %s7, [#allocation4], 128, 128, 8
    $region45: #{feed_forward_module.1} parent=1 // pred_fallthru
      _
    // Predicated region
    $region46: #{feed_forward_module.1} parent=1 // pred_check
      _
    $region47: #{feed_forward_module.1} parent=1 // pred_check_branch
      %394 = sbr.rel (0) target = $region49
    $region48: #{feed_forward_module.1} parent=1 // pred_region
      %395 = dma.done [#allocation4], 256
    $region49: #{feed_forward_module.1} parent=1 // pred_fallthru
      _
    %396 = vsyncpa [#allocation3], 1
    %397 = vsyncpa [#allocation6], 1
    %398 = vsyncpa [#allocation4], 1

</llo_original>
